<compile_context>
chip_gen: v7x
topology: tpu7x:2x2x1
jax: 0.10.0
libtpu: 0.0.40
codegen_flags: <defaults>
</compile_context>

<pallas_src>
import functools

import numpy as np
import jax
import jax.numpy as jnp
from jax import lax
from jax.experimental import pallas as pl
from jax.experimental.pallas import tpu as pltpu


# ----------------------------------------------------------------------------
# Pallas kernel (one active X-slab per grid step)
# ----------------------------------------------------------------------------
def _tv_grad_slab_kernel(sb_ref, ss_ref, st_ref,        # scalar prefetch (SMEM)
                         d_ref, h_ref,                   # VMEM inputs
                         g_ref,                          # VMEM output
                         *, R, TX, YZ, grid_size, count, cx, cy, cz):
    """TV gradient for one active X-slab of one (R, R, R) sigma grid (C == 1).

    d_ref : (TX, YZ)  density rows [x0, x0+TX), yz = y*R + z (lane-dense)
    h_ref : (2,  YZ)  halo rows x0-1 and x0+TX (zero when off-grid)
    g_ref : (TX, YZ)  TV gradient for rows [x0, x0+TX)
    """
    del sb_ref                     # only used by the index_maps
    i = pl.program_id(0)
    s = ss_ref[i]
    start = st_ref[i]
    x0 = s * TX

    d = d_ref[...]
    hp = h_ref[0:1, :]             # global row x0-1  (zeros if off-grid)
    hn = h_ref[1:2, :]             # global row x0+TX (zeros if off-grid)

    # Lane-only boundary masks, (1, YZ); broadcasting covers the sublane axis.
    yz = lax.broadcasted_iota(jnp.int32, (1, YZ), 1)
    if (R & (R - 1)) == 0:
        zi = yz & (R - 1)
    else:
        zi = jnp.remainder(yz, R)
    y_hi = yz >= (YZ - R)          # y == R-1
    y_lo = yz < R                  # y == 0
    z_hi = zi == (R - 1)           # z == R-1
    z_lo = zi == 0                 # z == 0

    row = lax.broadcasted_iota(jnp.int32, (TX, 1), 0)
    is_first = row == 0
    is_last = row == (TX - 1)

    # Selection mask: contiguous flat range [start, start+count) mod R^3,
    # rebuilt from SMEM scalars (no dense mask streamed from HBM).
    # TODO(synk): int32 flat-index math overflows for R >~ 1290.
    xr = row + x0                                        # (TX, 1) global x rows
    diff = xr * (R * R) + yz - start                     # (TX, YZ)
    sel = ((diff >= 0) & (diff < count)) | \
          ((diff < 0) & (diff + grid_size < count))
    sel = sel.astype(jnp.float32)

    # Forward differences.  +x via an XLU sublane roll with the wrapped last
    # row replaced by the halo; +y / +z via XLU lane rolls with boundary masks.
    dn = jnp.where(is_last, hn, pltpu.roll(d, TX - 1, axis=0))
    dx = dn - d
    dy = jnp.where(y_hi, 0.0, pltpu.roll(d, YZ - R, axis=1)) - d
    dz = jnp.where(z_hi, 0.0, pltpu.roll(d, YZ - 1, axis=1)) - d

    # rsqrt lands on the EUP; cx/cy/cz already fold scaling / num_selected.
    idelta = sel * lax.rsqrt(1e-9 + dx * dx + dy * dy + dz * dz)
    gx = dx * (cx * idelta)
    gy = dy * (cy * idelta)
    gz = dz * (cz * idelta)

    # Halo row x0-1 only contributes its +x term (gx at x0-1) into output row x0.
    xp = x0 - 1
    diff_p = xp * (R * R) + yz - start
    sel_p = ((diff_p >= 0) & (diff_p < count)) | \
            ((diff_p < 0) & (diff_p + grid_size < count))
    sel_p = jnp.logical_and(sel_p, xp >= 0).astype(jnp.float32)
    dx_p = d_ref[0:1, :] - hp
    dy_p = jnp.where(y_hi, 0.0, pltpu.roll(hp, YZ - R, axis=1)) - hp
    dz_p = jnp.where(z_hi, 0.0, pltpu.roll(hp, YZ - 1, axis=1)) - hp
    idelta_p = sel_p * lax.rsqrt(1e-9 + dx_p * dx_p + dy_p * dy_p + dz_p * dz_p)
    gx_p = dx_p * (cx * idelta_p)                        # (1, YZ)

    # Gather form of the CUDA scatter-add:
    #   g[x,y,z] = -(gx+gy+gz)[x,y,z] + gx[x-1,y,z] + gy[x,y-1,z] + gz[x,y,z-1]
    gx_prev = jnp.where(is_first, gx_p, pltpu.roll(gx, 1, axis=0))
    g = gx_prev - (gx + gy + gz)
    g = g + jnp.where(y_lo, 0.0, pltpu.roll(gy, R, axis=1))
    g = g + jnp.where(z_lo, 0.0, pltpu.roll(gz, 1, axis=1))
    g_ref[...] = g


# ----------------------------------------------------------------------------
# Wrapper
# ----------------------------------------------------------------------------
def _choose_tx(X, YZ, target_bytes=2 * 1024 * 1024):
    """Largest divisor of X that is a multiple of 8 and keeps the density block
    at/under ~target_bytes (~2 MiB; good pipeline efficiency on v5e/v6e/v7x).
    Falls back to the full X extent for small grids."""
    target_rows = max(8, target_bytes // (YZ * 4))
    if target_rows >= X:
        return X
    for cand in range(int(target_rows), 7, -1):
        if cand % 8 == 0 and X % cand == 0:
            return cand
    return X


def tv_grad_pallas(density, sel_start, sel_count, *, scaling, num_selected,
                   tx=None):
    """density: (B, R, R, R) f32; sel_start: (B,) host ints; sel_count: host int.

    Returns the TV gradient, shape (B, R, R, R).
    """
    density = jnp.asarray(density, jnp.float32)
    B, X, Y, Z = density.shape
    assert X == Y == Z, "cubic voxel grid expected"
    R = X
    YZ = Y * Z
    grid_size = R ** 3
    # The slab schedule below needs concrete host integers.
    starts = [int(v) % grid_size for v in np.asarray(sel_start).reshape(-1)]
    assert len(starts) == B
    count = int(sel_count)

    # --- X tiling: tx must divide X and be 8-aligned (or equal X) --------------
    tx = _choose_tx(X, YZ) if tx is None else int(tx)
    if tx >= X or X % tx != 0 or tx % 8 != 0:
        tx = X
    S = X // tx

    # --- lane-dense layout + tiny per-slab halo rows (no full-grid pads) -------
    d2 = density.reshape(B, X, YZ)
    zero_row = jnp.zeros((B, 1, YZ), jnp.float32)
    if S > 1:
        prev = jnp.concatenate([zero_row, d2[:, tx - 1::tx][:, :S - 1]], axis=1)
        nxt = jnp.concatenate([d2[:, tx::tx], zero_row], axis=1)
    else:
        prev, nxt = zero_row, zero_row
    halos = jnp.stack([prev, nxt], axis=2)               # (B, S, 2, YZ)

    # --- host-side compact schedule of active slabs -----------------------------
    xsz = R * R
    slab_b, slab_s, slab_st = [], [], []
    for b in range(B):
        st = starts[b]
        x_first = st // xsz
        x_last = ((st + count - 1) % grid_size) // xsz
        selected = np.zeros(X, bool)
        if st + count <= grid_size:
            selected[x_first:x_last + 1] = True
        else:                                            # wrapped contiguous range
            selected[x_first:] = True
            selected[:x_last + 1] = True
        affected = selected.copy()
        affected[1:] |= selected[:-1]                    # +x neighbours get grads too
        for si in range(S):
            if affected[si * tx:(si + 1) * tx].any():
                slab_b.append(b)
                slab_s.append(si)
                slab_st.append(st)
    num_active = len(slab_b)
    if num_active == 0:                                  # count >= 1 => cannot happen
        return jnp.zeros((B, X, Y, Z), jnp.float32)

    sb_arr = jnp.asarray(np.asarray(slab_b, np.int32))
    ss_arr = jnp.asarray(np.asarray(slab_s, np.int32))
    st_arr = jnp.asarray(np.asarray(slab_st, np.int32))

    # --- constants folded into the kernel ---------------------------------------
    scale = float(scaling) / float(num_selected)
    # CALCULATE_RAY_SCALE with ndc_coeffs = (-1, -1): scale_i = dim_i * 0.5
    cx, cy, cz = scale * (X * 0.5), scale * (Y * 0.5), scale * (Z * 0.5)

    kernel = functools.partial(
        _tv_grad_slab_kernel, R=R, TX=tx, YZ=YZ, grid_size=grid_size,
        count=count, cx=cx, cy=cy, cz=cz)

    # Double-buffered working set (density block + halo + output block); keep the
    # limit <= 60 MiB so it is safe on v7x (64 MiB physical VMEM per TC).
    block_bytes = (2 * tx + 2) * YZ * 4
    vmem_limit = int(min(60 * 1024 * 1024,
                         max(32 * 1024 * 1024, 4 * block_bytes)))

    # TODO(synk): if num_active == 1 (B == 1), the ("parallel",) grid leaves one
    #   v7x TensorCore idle; splitting that slab along YZ would recover it.
    blocks = pl.pallas_call(
        kernel,
        out_shape=jax.ShapeDtypeStruct((num_active, tx, YZ), jnp.float32),
        grid_spec=pltpu.PrefetchScalarGridSpec(
            num_scalar_prefetch=3,
            grid=(num_active,),
            in_specs=[
                pl.BlockSpec((None, tx, YZ),
                             lambda i, bref, sref, stref: (bref[i], sref[i], 0)),
                pl.BlockSpec((None, None, 2, YZ),
                             lambda i, bref, sref, stref: (bref[i], sref[i], 0, 0)),
            ],
            out_specs=pl.BlockSpec((None, tx, YZ),
                                   lambda i, bref, sref, stref: (i, 0, 0)),
        ),
        compiler_params=pltpu.CompilerParams(
            dimension_semantics=("parallel",),
            vmem_limit_bytes=vmem_limit),
    )(sb_arr, ss_arr, st_arr, d2, halos)

    # ~99% of slabs carry an exactly-zero gradient at tv_sparsity=0.01: fill the
    # output with an XLA zero-fill and scatter only the computed active blocks.
    out = jnp.zeros((B, X, YZ), jnp.float32)
    for i in range(num_active):
        b, si = slab_b[i], slab_s[i]
        out = out.at[b, si * tx:(si + 1) * tx, :].set(blocks[i])
    return out.reshape(B, X, Y, Z)


# ----------------------------------------------------------------------------
# Pure-JAX reference (same math / boundary convention), for validation
# ----------------------------------------------------------------------------
def _shift_fwd(a, axis):
    sl = [slice(None)] * a.ndim
    sl[axis] = slice(1, None)
    zshape = list(a.shape)
    zshape[axis] = 1
    return jnp.concatenate([a[tuple(sl)], jnp.zeros(zshape, a.dtype)], axis=axis)


def _shift_bwd(a, axis):
    sl = [slice(None)] * a.ndim
    sl[axis] = slice(0, a.shape[axis] - 1)
    zshape = list(a.shape)
    zshape[axis] = 1
    return jnp.concatenate([jnp.zeros(zshape, a.dtype), a[tuple(sl)]], axis=axis)


def tv_grad_reference(density, sel_start, sel_count, *, scaling, num_selected):
    B, X, Y, Z = density.shape
    R = X
    gs = R ** 3
    scale = float(scaling) / float(num_selected)
    cx, cy, cz = scale * (X * 0.5), scale * (Y * 0.5), scale * (Z * 0.5)
    flat = np.arange(gs, dtype=np.int64).reshape(R, R, R)
    outs = []
    for b in range(B):
        st = int(np.asarray(sel_start).reshape(-1)[b]) % gs
        sel = jnp.asarray(((flat - st) % gs) < int(sel_count), jnp.float32)
        d = density[b]
        dx = _shift_fwd(d, 0) - d
        dy = _shift_fwd(d, 1) - d
        dz = _shift_fwd(d, 2) - d
        idelta = sel * jax.lax.rsqrt(1e-9 + dx * dx + dy * dy + dz * dz)
        gx = dx * (cx * idelta)
        gy = dy * (cy * idelta)
        gz = dz * (cz * idelta)
        g = _shift_bwd(gx, 0) - (gx + gy + gz)
        g = g + _shift_bwd(gy, 1)
        g = g + _shift_bwd(gz, 2)
        outs.append(g)
    return jnp.stack(outs, axis=0)


# ----------------------------------------------------------------------------
# Module wrapper
# ----------------------------------------------------------------------------
class TVLoss:
    """JAX/Pallas re-implementation of the hot path of voxgraf TVLoss.forward."""

    def __init__(self, lambda_tv=1e-05, tv_sparsity=0.01):
        self.lambda_tv = lambda_tv
        self.tv_sparsity = tv_sparsity
        self.tv_contiguous = 1
        self.ndc_coeffs = (-1, -1)

    def _rand_cells_start(self, resolution, seed):
        # TODO(synk): deterministic analogue of _get_rand_cells(contiguous=True);
        # it does not reproduce the original np.random global-RNG stream.
        grid_size = resolution ** 3
        sparse_num = max(int(self.tv_sparsity * grid_size), 1)
        rng = np.random.RandomState(seed)
        return int(rng.randint(0, grid_size)), sparse_num

    def forward(self, density_data_list, grid_res):
        if self.lambda_tv == 0:
            return None
        R = grid_res
        B = len(density_data_list)
        # Dense identity links: density row index == x*R*R + y*R + z.
        dens = jnp.stack(
            [d.reshape(R, R, R) for d in density_data_list], axis=0)
        starts = []
        sparse_num = 1
        for b in range(B):
            st, sparse_num = self._rand_cells_start(R, seed=1234 + b)
            starts.append(st)
        grad = tv_grad_pallas(dens, np.asarray(starts), sparse_num,
                              scaling=self.lambda_tv, num_selected=sparse_num)
        # Match grad_all shape (N, C) with N = sum(len(d)) and C = 1.
        return grad.reshape(B * R ** 3, 1)


if __name__ == "__main__":
    key = jax.random.PRNGKey(0)
    B, R, C = 2, 16, 1
    keys = jax.random.split(key, B)
    density_data_list = [
        jax.random.normal(k, (R ** 3, C), dtype=jnp.float32) for k in keys
    ]

    # --- direct kernel check vs. pure-JAX reference -----------------------------
    dens = jnp.stack([d.reshape(R, R, R) for d in density_data_list], axis=0)
    grid_size = R ** 3
    sparse_num = max(int(0.01 * grid_size), 1)
    # batch0: selection crosses the x-plane 7/8 boundary (exercises the
    # inter-slab halo when tx=8); batch1: selection wraps past the grid end.
    starts = np.array([7 * R * R + 250, grid_size - 6])
    lam = 1e-5

    ref = tv_grad_reference(dens, starts, sparse_num, scaling=lam,
                            num_selected=sparse_num)
    tol = 5e-3 * float(jnp.max(jnp.abs(ref))) + 1e-9

    for forced_tx in (None, 8):   # default whole-grid block, and the tiled path
        out = tv_grad_pallas(dens, starts, sparse_num, scaling=lam,
                             num_selected=sparse_num, tx=forced_tx)
        out = jax.block_until_ready(out)
        assert out.shape == (B, R, R, R)
        assert bool(jnp.all(jnp.isfinite(out)))
        err = float(jnp.max(jnp.abs(out - ref)))
        assert err <= tol, f"tx={forced_tx}: kernel/reference mismatch err={err}, tol={tol}"

    # --- module-level forward (default auto tiling) ------------------------------
    tv = TVLoss(lambda_tv=1e-05, tv_sparsity=0.01)
    grad = tv.forward(density_data_list, grid_res=R)
    grad = jax.block_until_ready(grad)
    assert grad.shape == (B * R ** 3, C)
    assert bool(jnp.all(jnp.isfinite(grad)))
    print("KERNEL_OK")
</pallas_src>

<mosaic_0001>
module attributes {stable_mosaic.version = 11 : i64} {
  func.func @_tv_grad_slab_kernel(%arg0: i32, %arg1: memref<2xi32, #tpu.memory_space<smem>>, %arg2: memref<2xi32, #tpu.memory_space<smem>>, %arg3: memref<2xi32, #tpu.memory_space<smem>>, %arg4: memref<1x16x256xf32, #tpu.memory_space<vmem>>, %arg5: memref<1x1x2x256xf32, #tpu.memory_space<vmem>>, %arg6: memref<1x16x256xf32, #tpu.memory_space<vmem>>) attributes {dimension_semantics = [#tpu.dimension_semantics<parallel>], iteration_bounds = array<i64: 2>, scalar_prefetch = 3 : i64, scratch_operands = 0 : i64, tpu.core_type = #tpu.core_type<tc>, window_params = [{transform_indices = @transform_0, window_bounds = array<i64: 1, 16, 256>}, {transform_indices = @transform_1, window_bounds = array<i64: 1, 1, 2, 256>}, {transform_indices = @transform_2, window_bounds = array<i64: 1, 16, 256>}]} {
    %0 = arith.index_cast %arg0 : i32 to index
    %1 = memref.load %arg2[%0] : memref<2xi32, #tpu.memory_space<smem>>
    %2 = arith.index_cast %arg0 : i32 to index
    %3 = memref.load %arg3[%2] : memref<2xi32, #tpu.memory_space<smem>>
    %c16_i32 = arith.constant 16 : i32
    %4 = arith.muli %1, %c16_i32 : i32
    %c0 = arith.constant 0 : index
    %c0_0 = arith.constant 0 : index
    %c0_1 = arith.constant 0 : index
    %5 = vector.load %arg4[%c0, %c0_0, %c0_1] : memref<1x16x256xf32, #tpu.memory_space<vmem>>, vector<1x16x256xf32>
    %6 = vector.shape_cast %5 : vector<1x16x256xf32> to vector<16x256xf32>
    %c0_2 = arith.constant 0 : index
    %c0_3 = arith.constant 0 : index
    %c0_4 = arith.constant 0 : index
    %c0_5 = arith.constant 0 : index
    %7 = vector.load %arg5[%c0_2, %c0_3, %c0_4, %c0_5] : memref<1x1x2x256xf32, #tpu.memory_space<vmem>>, vector<1x1x1x256xf32>
    %8 = vector.shape_cast %7 : vector<1x1x1x256xf32> to vector<1x256xf32>
    %c0_6 = arith.constant 0 : index
    %c0_7 = arith.constant 0 : index
    %c1 = arith.constant 1 : index
    %c0_8 = arith.constant 0 : index
    %9 = vector.load %arg5[%c0_6, %c0_7, %c1, %c0_8] : memref<1x1x2x256xf32, #tpu.memory_space<vmem>>, vector<1x1x1x256xf32>
    %10 = vector.shape_cast %9 : vector<1x1x1x256xf32> to vector<1x256xf32>
    %11 = tpu.iota {dimensions = array<i32: 1>} : vector<1x256xi32>
    %c15_i32 = arith.constant 15 : i32
    %12 = vector.broadcast %c15_i32 : i32 to vector<1x256xi32>
    %13 = arith.andi %11, %12 : vector<1x256xi32>
    %c240_i32 = arith.constant 240 : i32
    %14 = vector.broadcast %c240_i32 : i32 to vector<1x256xi32>
    %15 = arith.cmpi sge, %11, %14 : vector<1x256xi32>
    %c16_i32_9 = arith.constant 16 : i32
    %16 = vector.broadcast %c16_i32_9 : i32 to vector<1x256xi32>
    %17 = arith.cmpi slt, %11, %16 : vector<1x256xi32>
    %c15_i32_10 = arith.constant 15 : i32
    %18 = vector.broadcast %c15_i32_10 : i32 to vector<1x256xi32>
    %19 = arith.cmpi eq, %13, %18 : vector<1x256xi32>
    %c0_i32 = arith.constant 0 : i32
    %20 = vector.broadcast %c0_i32 : i32 to vector<1x256xi32>
    %21 = arith.cmpi eq, %13, %20 : vector<1x256xi32>
    %22 = tpu.iota {dimensions = array<i32: 0>} : vector<16x1xi32>
    %c0_i32_11 = arith.constant 0 : i32
    %23 = vector.broadcast %c0_i32_11 : i32 to vector<16x1xi32>
    %24 = arith.cmpi eq, %22, %23 : vector<16x1xi32>
    %c15_i32_12 = arith.constant 15 : i32
    %25 = vector.broadcast %c15_i32_12 : i32 to vector<16x1xi32>
    %26 = arith.cmpi eq, %22, %25 : vector<16x1xi32>
    %27 = vector.broadcast %4 : i32 to vector<16x1xi32>
    %28 = arith.addi %22, %27 : vector<16x1xi32>
    %c256_i32 = arith.constant 256 : i32
    %29 = vector.broadcast %c256_i32 : i32 to vector<16x1xi32>
    %30 = arith.muli %28, %29 : vector<16x1xi32>
    %31 = vector.broadcast %30 : vector<16x1xi32> to vector<16x256xi32>
    %32 = vector.broadcast %11 : vector<1x256xi32> to vector<16x256xi32>
    %33 = arith.addi %31, %32 : vector<16x256xi32>
    %34 = vector.broadcast %3 : i32 to vector<16x256xi32>
    %35 = arith.subi %33, %34 : vector<16x256xi32>
    %c0_i32_13 = arith.constant 0 : i32
    %36 = vector.broadcast %c0_i32_13 : i32 to vector<16x256xi32>
    %37 = arith.cmpi sge, %35, %36 : vector<16x256xi32>
    %c40_i32 = arith.constant 40 : i32
    %38 = vector.broadcast %c40_i32 : i32 to vector<16x256xi32>
    %39 = arith.cmpi slt, %35, %38 : vector<16x256xi32>
    %40 = arith.andi %37, %39 : vector<16x256xi1>
    %c0_i32_14 = arith.constant 0 : i32
    %41 = vector.broadcast %c0_i32_14 : i32 to vector<16x256xi32>
    %42 = arith.cmpi slt, %35, %41 : vector<16x256xi32>
    %c4096_i32 = arith.constant 4096 : i32
    %43 = vector.broadcast %c4096_i32 : i32 to vector<16x256xi32>
    %44 = arith.addi %35, %43 : vector<16x256xi32>
    %c40_i32_15 = arith.constant 40 : i32
    %45 = vector.broadcast %c40_i32_15 : i32 to vector<16x256xi32>
    %46 = arith.cmpi slt, %44, %45 : vector<16x256xi32>
    %47 = arith.andi %42, %46 : vector<16x256xi1>
    %48 = arith.ori %40, %47 : vector<16x256xi1>
    %49 = arith.extui %48 : vector<16x256xi1> to vector<16x256xi32>
    %50 = arith.sitofp %49 : vector<16x256xi32> to vector<16x256xf32>
    %c15_i32_16 = arith.constant 15 : i32
    %51 = tpu.dynamic_rotate %6 by %c15_i32_16 dim 0 : vector<16x256xf32>, i32 -> vector<16x256xf32>
    %52 = vector.shape_cast %26 : vector<16x1xi1> to vector<16x1xi1>
    %53 = vector.broadcast %52 : vector<16x1xi1> to vector<16x256xi1>
    %54 = vector.shape_cast %10 : vector<1x256xf32> to vector<1x256xf32>
    %55 = vector.broadcast %54 : vector<1x256xf32> to vector<16x256xf32>
    %56 = arith.select %53, %55, %51 : vector<16x256xi1>, vector<16x256xf32>
    %57 = arith.subf %56, %6 : vector<16x256xf32>
    %c240_i32_17 = arith.constant 240 : i32
    %58 = tpu.dynamic_rotate %6 by %c240_i32_17 dim 1 : vector<16x256xf32>, i32 -> vector<16x256xf32>
    %cst = arith.constant 0.000000e+00 : f32
    %59 = vector.shape_cast %15 : vector<1x256xi1> to vector<1x256xi1>
    %60 = vector.broadcast %59 : vector<1x256xi1> to vector<16x256xi1>
    %61 = vector.broadcast %cst : f32 to vector<16x256xf32>
    %62 = arith.select %60, %61, %58 : vector<16x256xi1>, vector<16x256xf32>
    %63 = arith.subf %62, %6 : vector<16x256xf32>
    %c255_i32 = arith.constant 255 : i32
    %64 = tpu.dynamic_rotate %6 by %c255_i32 dim 1 : vector<16x256xf32>, i32 -> vector<16x256xf32>
    %cst_18 = arith.constant 0.000000e+00 : f32
    %65 = vector.shape_cast %19 : vector<1x256xi1> to vector<1x256xi1>
    %66 = vector.broadcast %65 : vector<1x256xi1> to vector<16x256xi1>
    %67 = vector.broadcast %cst_18 : f32 to vector<16x256xf32>
    %68 = arith.select %66, %67, %64 : vector<16x256xi1>, vector<16x256xf32>
    %69 = arith.subf %68, %6 : vector<16x256xf32>
    %70 = arith.mulf %57, %57 : vector<16x256xf32>
    %cst_19 = arith.constant 9.99999971E-10 : f32
    %71 = vector.broadcast %cst_19 : f32 to vector<16x256xf32>
    %72 = arith.addf %71, %70 : vector<16x256xf32>
    %73 = arith.mulf %63, %63 : vector<16x256xf32>
    %74 = arith.addf %72, %73 : vector<16x256xf32>
    %75 = arith.mulf %69, %69 : vector<16x256xf32>
    %76 = arith.addf %74, %75 : vector<16x256xf32>
    %77 = math.rsqrt %76 : vector<16x256xf32>
    %78 = arith.mulf %50, %77 : vector<16x256xf32>
    %cst_20 = arith.constant 2.000000e-06 : f32
    %79 = vector.broadcast %cst_20 : f32 to vector<16x256xf32>
    %80 = arith.mulf %79, %78 : vector<16x256xf32>
    %81 = arith.mulf %57, %80 : vector<16x256xf32>
    %cst_21 = arith.constant 2.000000e-06 : f32
    %82 = vector.broadcast %cst_21 : f32 to vector<16x256xf32>
    %83 = arith.mulf %82, %78 : vector<16x256xf32>
    %84 = arith.mulf %63, %83 : vector<16x256xf32>
    %cst_22 = arith.constant 2.000000e-06 : f32
    %85 = vector.broadcast %cst_22 : f32 to vector<16x256xf32>
    %86 = arith.mulf %85, %78 : vector<16x256xf32>
    %87 = arith.mulf %69, %86 : vector<16x256xf32>
    %c1_i32 = arith.constant 1 : i32
    %88 = arith.subi %4, %c1_i32 : i32
    %c256_i32_23 = arith.constant 256 : i32
    %89 = arith.muli %88, %c256_i32_23 : i32
    %90 = vector.broadcast %89 : i32 to vector<1x256xi32>
    %91 = arith.addi %90, %11 : vector<1x256xi32>
    %92 = vector.broadcast %3 : i32 to vector<1x256xi32>
    %93 = arith.subi %91, %92 : vector<1x256xi32>
    %c0_i32_24 = arith.constant 0 : i32
    %94 = vector.broadcast %c0_i32_24 : i32 to vector<1x256xi32>
    %95 = arith.cmpi sge, %93, %94 : vector<1x256xi32>
    %c40_i32_25 = arith.constant 40 : i32
    %96 = vector.broadcast %c40_i32_25 : i32 to vector<1x256xi32>
    %97 = arith.cmpi slt, %93, %96 : vector<1x256xi32>
    %98 = arith.andi %95, %97 : vector<1x256xi1>
    %c0_i32_26 = arith.constant 0 : i32
    %99 = vector.broadcast %c0_i32_26 : i32 to vector<1x256xi32>
    %100 = arith.cmpi slt, %93, %99 : vector<1x256xi32>
    %c4096_i32_27 = arith.constant 4096 : i32
    %101 = vector.broadcast %c4096_i32_27 : i32 to vector<1x256xi32>
    %102 = arith.addi %93, %101 : vector<1x256xi32>
    %c40_i32_28 = arith.constant 40 : i32
    %103 = vector.broadcast %c40_i32_28 : i32 to vector<1x256xi32>
    %104 = arith.cmpi slt, %102, %103 : vector<1x256xi32>
    %105 = arith.andi %100, %104 : vector<1x256xi1>
    %106 = arith.ori %98, %105 : vector<1x256xi1>
    %c0_i32_29 = arith.constant 0 : i32
    %107 = arith.cmpi sge, %88, %c0_i32_29 : i32
    %108 = vector.broadcast %107 : i1 to vector<1x256xi1>
    %109 = arith.andi %106, %108 : vector<1x256xi1>
    %110 = arith.extui %109 : vector<1x256xi1> to vector<1x256xi32>
    %111 = arith.sitofp %110 : vector<1x256xi32> to vector<1x256xf32>
    %c0_30 = arith.constant 0 : index
    %c0_31 = arith.constant 0 : index
    %c0_32 = arith.constant 0 : index
    %112 = vector.load %arg4[%c0_30, %c0_31, %c0_32] : memref<1x16x256xf32, #tpu.memory_space<vmem>>, vector<1x1x256xf32>
    %113 = vector.shape_cast %112 : vector<1x1x256xf32> to vector<1x256xf32>
    %114 = arith.subf %113, %8 : vector<1x256xf32>
    %c240_i32_33 = arith.constant 240 : i32
    %115 = tpu.dynamic_rotate %8 by %c240_i32_33 dim 1 : vector<1x256xf32>, i32 -> vector<1x256xf32>
    %cst_34 = arith.constant 0.000000e+00 : f32
    %116 = vector.broadcast %cst_34 : f32 to vector<1x256xf32>
    %117 = arith.select %15, %116, %115 : vector<1x256xi1>, vector<1x256xf32>
    %118 = arith.subf %117, %8 : vector<1x256xf32>
    %c255_i32_35 = arith.constant 255 : i32
    %119 = tpu.dynamic_rotate %8 by %c255_i32_35 dim 1 : vector<1x256xf32>, i32 -> vector<1x256xf32>
    %cst_36 = arith.constant 0.000000e+00 : f32
    %120 = vector.broadcast %cst_36 : f32 to vector<1x256xf32>
    %121 = arith.select %19, %120, %119 : vector<1x256xi1>, vector<1x256xf32>
    %122 = arith.subf %121, %8 : vector<1x256xf32>
    %123 = arith.mulf %114, %114 : vector<1x256xf32>
    %cst_37 = arith.constant 9.99999971E-10 : f32
    %124 = vector.broadcast %cst_37 : f32 to vector<1x256xf32>
    %125 = arith.addf %124, %123 : vector<1x256xf32>
    %126 = arith.mulf %118, %118 : vector<1x256xf32>
    %127 = arith.addf %125, %126 : vector<1x256xf32>
    %128 = arith.mulf %122, %122 : vector<1x256xf32>
    %129 = arith.addf %127, %128 : vector<1x256xf32>
    %130 = math.rsqrt %129 : vector<1x256xf32>
    %131 = arith.mulf %111, %130 : vector<1x256xf32>
    %cst_38 = arith.constant 2.000000e-06 : f32
    %132 = vector.broadcast %cst_38 : f32 to vector<1x256xf32>
    %133 = arith.mulf %132, %131 : vector<1x256xf32>
    %134 = arith.mulf %114, %133 : vector<1x256xf32>
    %c1_i32_39 = arith.constant 1 : i32
    %135 = tpu.dynamic_rotate %81 by %c1_i32_39 dim 0 : vector<16x256xf32>, i32 -> vector<16x256xf32>
    %136 = vector.shape_cast %24 : vector<16x1xi1> to vector<16x1xi1>
    %137 = vector.broadcast %136 : vector<16x1xi1> to vector<16x256xi1>
    %138 = vector.shape_cast %134 : vector<1x256xf32> to vector<1x256xf32>
    %139 = vector.broadcast %138 : vector<1x256xf32> to vector<16x256xf32>
    %140 = arith.select %137, %139, %135 : vector<16x256xi1>, vector<16x256xf32>
    %141 = arith.addf %81, %84 : vector<16x256xf32>
    %142 = arith.addf %141, %87 : vector<16x256xf32>
    %143 = arith.subf %140, %142 : vector<16x256xf32>
    %c16_i32_40 = arith.constant 16 : i32
    %144 = tpu.dynamic_rotate %84 by %c16_i32_40 dim 1 : vector<16x256xf32>, i32 -> vector<16x256xf32>
    %cst_41 = arith.constant 0.000000e+00 : f32
    %145 = vector.shape_cast %17 : vector<1x256xi1> to vector<1x256xi1>
    %146 = vector.broadcast %145 : vector<1x256xi1> to vector<16x256xi1>
    %147 = vector.broadcast %cst_41 : f32 to vector<16x256xf32>
    %148 = arith.select %146, %147, %144 : vector<16x256xi1>, vector<16x256xf32>
    %149 = arith.addf %143, %148 : vector<16x256xf32>
    %c1_i32_42 = arith.constant 1 : i32
    %150 = tpu.dynamic_rotate %87 by %c1_i32_42 dim 1 : vector<16x256xf32>, i32 -> vector<16x256xf32>
    %cst_43 = arith.constant 0.000000e+00 : f32
    %151 = vector.shape_cast %21 : vector<1x256xi1> to vector<1x256xi1>
    %152 = vector.broadcast %151 : vector<1x256xi1> to vector<16x256xi1>
    %153 = vector.broadcast %cst_43 : f32 to vector<16x256xf32>
    %154 = arith.select %152, %153, %150 : vector<16x256xi1>, vector<16x256xf32>
    %155 = arith.addf %149, %154 : vector<16x256xf32>
    %c0_44 = arith.constant 0 : index
    %c0_45 = arith.constant 0 : index
    %c0_46 = arith.constant 0 : index
    %156 = vector.load %arg6[%c0_44, %c0_45, %c0_46] : memref<1x16x256xf32, #tpu.memory_space<vmem>>, vector<1x16x256xf32>
    %157 = vector.shape_cast %156 : vector<1x16x256xf32> to vector<16x256xf32>
    %158 = vector.shape_cast %155 : vector<16x256xf32> to vector<1x16x256xf32>
    tpu.vector_store %arg6[%c0_44, %c0_45, %c0_46], %158 {strides = array<i32>} : memref<1x16x256xf32, #tpu.memory_space<vmem>>, vector<1x16x256xf32>,
    return
  }
  func.func @transform_0(%arg0: i32, %arg1: memref<2xi32, #tpu.memory_space<smem>>, %arg2: memref<2xi32, #tpu.memory_space<smem>>, %arg3: memref<2xi32, #tpu.memory_space<smem>>) -> (i32, i32, i32) {
    %0 = arith.index_cast %arg0 : i32 to index
    %1 = memref.load %arg1[%0] : memref<2xi32, #tpu.memory_space<smem>>
    %2 = arith.index_cast %arg0 : i32 to index
    %3 = memref.load %arg2[%2] : memref<2xi32, #tpu.memory_space<smem>>
    %c0_i32 = arith.constant 0 : i32
    %c0_i32_0 = arith.constant 0 : i32
    return %1, %3, %c0_i32 : i32, i32, i32
  }
  func.func @transform_1(%arg0: i32, %arg1: memref<2xi32, #tpu.memory_space<smem>>, %arg2: memref<2xi32, #tpu.memory_space<smem>>, %arg3: memref<2xi32, #tpu.memory_space<smem>>) -> (i32, i32, i32, i32) {
    %0 = arith.index_cast %arg0 : i32 to index
    %1 = memref.load %arg1[%0] : memref<2xi32, #tpu.memory_space<smem>>
    %2 = arith.index_cast %arg0 : i32 to index
    %3 = memref.load %arg2[%2] : memref<2xi32, #tpu.memory_space<smem>>
    %c0_i32 = arith.constant 0 : i32
    %c0_i32_0 = arith.constant 0 : i32
    %c0_i32_1 = arith.constant 0 : i32
    return %1, %3, %c0_i32, %c0_i32_0 : i32, i32, i32, i32
  }
  func.func @transform_2(%arg0: i32, %arg1: memref<2xi32, #tpu.memory_space<smem>>, %arg2: memref<2xi32, #tpu.memory_space<smem>>, %arg3: memref<2xi32, #tpu.memory_space<smem>>) -> (i32, i32, i32) {
    %c0_i32 = arith.constant 0 : i32
    %c0_i32_0 = arith.constant 0 : i32
    %c0_i32_1 = arith.constant 0 : i32
    return %arg0, %c0_i32, %c0_i32_0 : i32, i32, i32
  }
}

</mosaic_0001>

<llo_original>
// kernel: tpu_custom_call.1
$region0: #{tpu_custom_call.1}
  #allocation0 [shape = 'u32[]', space=smem, size = 0x4, offset = 0x4, fixed_abs, tag = 'smem constant byte address 0x4 - core index']
  #allocation1 [shape = 'u32[144,128]{1,0:T(1,128)}', space=vmem, size = 0x12000, scoped, tag = 'internal scratch']
  #allocation2 [shape = 's32[1]{0}', space=sflag, size = 0x4, scoped, tag = 'scoped memory for tpu_custom_call.1']
  #allocation3 [shape = 'u8[512]{0}', space=smem, size = 0x200, scoped, tag = 'prefetched SMEM operand 0']
  #allocation4 [shape = 'u8[512]{0}', space=smem, size = 0x200, scoped, tag = 'prefetched SMEM operand 1']
  #allocation5 [shape = 'u8[512]{0}', space=smem, size = 0x200, scoped, tag = 'prefetched SMEM operand 2']
  %s0 = inlined_call_operand.hbm [shape: s32[2], index: 0, kind: input, shape index: {}]
  %s1 = inlined_call_operand.vmem [shape: s32[2], index: 1, kind: input, shape index: {}]
  %s2 = inlined_call_operand.vmem [shape: s32[2], index: 2, kind: input, shape index: {}]
  %s3 = inlined_call_operand.hbm [shape: f32[2,16,256], index: 3, kind: input, shape index: {}]
  %s4 = inlined_call_operand.vmem [shape: f32[2,1,2,256], index: 4, kind: input, shape index: {}]
  %s5 = inlined_call_operand.hbm [shape: f32[2,16,256], index: 5, kind: output, shape index: {}]
  %s6 = sld [smem:[#allocation0]]
  $region45: #{tpu_custom_call.1} parent=0
    _
  %s8 = ssub.s32 1, %s6
  %s9 = scalar_select 0, %s8, %s6
  %11 = dma.hbm_to_smem %s0, 16, [#allocation3], [#allocation2]
  %s12 = sshll.u32 %s1, 4
  %s13 = int_to_ptr.vmem [resolvable:$true] %s12
  %15 = dma.vmem_to_smem %s13, 16, [#allocation4], [#allocation2]
  %s16 = sshll.u32 %s2, 4
  %s17 = int_to_ptr.vmem [resolvable:$true] %s16
  %19 = dma.vmem_to_smem %s17, 16, [#allocation5], [#allocation2]
  %20 = dma.done [#allocation2], 48
  %21 = sfence
  $region1: #{tpu_custom_call.1} parent=0
    #allocation6 [shape = 'u8[32768]{0}', space=vmem, size = 0x8000, scoped, tag = 'input window, operand 3']
    #allocation7 [shape = 's32[2]{0}', space=sflag, size = 0x8, scoped, tag = 'scoped memory for tpu_custom_call.1']
    #allocation8 [shape = 's32[2]{0}', space=sflag, size = 0x8, scoped, tag = 'scoped memory for tpu_custom_call.1']
    #allocation9 [shape = 'u8[32768]{0}', space=vmem, size = 0x8000, scoped, tag = 'output window, operand 0']
    %22 = vsyncpa [#allocation7], 0
    %s23 = scalar_lea.sflag [#allocation7], 1
    %24 = vsyncpa %s23, 0
    %25 = vsyncpa [#allocation8], 0
    %s26 = scalar_lea.sflag [#allocation8], 1
    %27 = vsyncpa %s26, 0
    loop: start=0, step=1, limit=4
    $region2: #{tpu_custom_call.1} parent=1 // loop_pre_header
      _
    $region3: #{tpu_custom_call.1} parent=1 // loop_header
      %s29 = sphi 0, %s33
      %p30 = scmp.ge.s32.totalorder %s29, 4
      %s45 = sphi 0, %s47
      %s48 = sphi 0, %s45
      %s49 = sphi 0, %s48
      %s65 = sphi 0, %s49
      %s77 = sphi 0, %s79
      %s80 = sphi 0, %s77
      %s81 = sphi 0, %s80
      %s97 = sphi 0, %s81
      %s103 = sphi 0, %s105
      %s106 = sphi 0, %s103
      %s107 = sphi 0, %s106
      %s123 = sphi 0, %s107
    $region4: #{tpu_custom_call.1} parent=1 // loop_header_branch
      %32 = sbr.rel (%p30) target = $region8
    $region5: #{tpu_custom_call.1} parent=1 // loop_body
      %s34 = ssub.s32 %s29, 1
      %s35 = ssub.s32 %s29, 2
      %s36 = sadd.s32 %s29, 1
      %s37 = sld [smem:[#allocation3 + %s29]]
      %s38 = sld [smem:[#allocation4 + %s29]]
      %s39 = sld [smem:[#allocation3 + %s36]]
      %s40 = sld [smem:[#allocation4 + %s36]]
      %s41 = ssub.s32 %s37, %s39
      %s42 = ssub.s32 %s38, %s40
      %s43 = sor.u32 %s41, %s42
      %p44 = scmp.eq.s32.totalorder %s43, 0
      %s46 = sadd.s32 %s45, 1
      %s47 = scalar_select %p44, %s45, %s46
      %p50 = pneg %p44
      %p51 = scmp.eq.s32.totalorder %s29, 1
      %p52 = por %p50, %p51
      %p53 = scmp.ne.s32.totalorder %s45, %s48
      %p54 = scmp.eq.s32.totalorder %s29, 0
      %p55 = por %p53, %p54
      %p56 = scmp.ne.s32.totalorder %s45, %s48
      %p57 = scmp.eq.s32.totalorder %s34, 1
      %p58 = por %p56, %p57
      %p59 = scmp.ne.s32.totalorder %s48, %s49
      %p60 = scmp.eq.s32.totalorder %s34, 0
      %p61 = por %p59, %p60
      %p62 = scmp.ne.s32.totalorder %s48, %s49
      %p63 = scmp.eq.s32.totalorder %s35, 1
      %p64 = por %p62, %p63
      %p66 = scmp.ne.s32.totalorder %s49, %s65
      %p67 = scmp.eq.s32.totalorder %s35, 0
      %p68 = por %p66, %p67
      %s69 = sld [smem:[#allocation3 + %s29]]
      %s70 = sld [smem:[#allocation4 + %s29]]
      %s71 = sld [smem:[#allocation3 + %s36]]
      %s72 = sld [smem:[#allocation4 + %s36]]
      %s73 = ssub.s32 %s69, %s71
      %s74 = ssub.s32 %s70, %s72
      %s75 = sor.u32 %s73, %s74
      %p76 = scmp.eq.s32.totalorder %s75, 0
      %s78 = sadd.s32 %s77, 1
      %s79 = scalar_select %p76, %s77, %s78
      %p82 = pneg %p76
      %p83 = scmp.eq.s32.totalorder %s29, 1
      %p84 = por %p82, %p83
      %p85 = scmp.ne.s32.totalorder %s77, %s80
      %p86 = scmp.eq.s32.totalorder %s29, 0
      %p87 = por %p85, %p86
      %p88 = scmp.ne.s32.totalorder %s77, %s80
      %p89 = scmp.eq.s32.totalorder %s34, 1
      %p90 = por %p88, %p89
      %p91 = scmp.ne.s32.totalorder %s80, %s81
      %p92 = scmp.eq.s32.totalorder %s34, 0
      %p93 = por %p91, %p92
      %p94 = scmp.ne.s32.totalorder %s80, %s81
      %p95 = scmp.eq.s32.totalorder %s35, 1
      %p96 = por %p94, %p95
      %p98 = scmp.ne.s32.totalorder %s81, %s97
      %p99 = scmp.eq.s32.totalorder %s35, 0
      %p100 = por %p98, %p99
      %s101 = ssub.s32 %s29, %s36
      %p102 = scmp.eq.s32.totalorder %s101, 0
      %s104 = sadd.s32 %s103, 1
      %s105 = scalar_select %p102, %s103, %s104
      %p108 = pneg %p102
      %p109 = scmp.eq.s32.totalorder %s29, 1
      %p110 = por %p108, %p109
      %p111 = scmp.ne.s32.totalorder %s103, %s106
      %p112 = scmp.eq.s32.totalorder %s29, 0
      %p113 = por %p111, %p112
      %p114 = scmp.ne.s32.totalorder %s103, %s106
      %p115 = scmp.eq.s32.totalorder %s34, 1
      %p116 = por %p114, %p115
      %p117 = scmp.ne.s32.totalorder %s106, %s107
      %p118 = scmp.eq.s32.totalorder %s34, 0
      %p119 = por %p117, %p118
      %p120 = scmp.ne.s32.totalorder %s106, %s107
      %p121 = scmp.eq.s32.totalorder %s35, 1
      %p122 = por %p120, %p121
      %p124 = scmp.ne.s32.totalorder %s107, %s123
      %p125 = scmp.eq.s32.totalorder %s35, 0
      %p126 = por %p124, %p125
      %p127 = scmp.le.s32.totalorder 1, %s29
      %p128 = scmp.lt.s32.totalorder %s29, 3
      %p129 = pnand %p127, %p128
      %p130 = pneg %p129
      // Predicated region
      $region9: #{tpu_custom_call.1} parent=5 // pred_check
        _
      $region10: #{tpu_custom_call.1} parent=5 // pred_check_branch
        %132 = sbr.rel (%p129) target = $region12
      $region11: #{tpu_custom_call.1} parent=5 // pred_region
        %s133 = ssub.s32 %s29, 1
      $region12: #{tpu_custom_call.1} parent=5 // pred_fallthru
        _
      %p134 = scmp.lt.s32.totalorder %s29, 2
      // Predicated region
      $region13: #{tpu_custom_call.1} parent=5 // pred_check
        %p135 = pneg %p134
      $region14: #{tpu_custom_call.1} parent=5 // pred_check_branch
        %137 = sbr.rel (%p135) target = $region16
      $region15: #{tpu_custom_call.1} parent=5 // pred_region
        // Predicated region
        $region17: #{tpu_custom_call.1} parent=15 // pred_check
          %p138 = pneg %p55
        $region18: #{tpu_custom_call.1} parent=15 // pred_check_branch
          %140 = sbr.rel (%p138) target = $region20
        $region19: #{tpu_custom_call.1} parent=15 // pred_region
          %s141 = sand.u32 %s45, 1
          %s142 = scalar_lea.sflag [#allocation7], %s141
          %s143 = sand.u32 %s45, 1
          %s144 = smul.addr %s143, 32
          %s145 = scalar_lea.vmem [#allocation6], %s144
          %s146 = sld [smem:[#allocation3 + %s29]]
          %s147 = sld [smem:[#allocation4 + %s29]]
          %s148 = smul.u32 2, %s147
          %s150 = ssub.s32 512, 512
          %151 = vsyncadd %s142, %s150
          %s152 = smul.addr %s148, 2
          %s153 = smul.addr %s146, 4
          %s154 = sadd.s32 %s152, %s153
          %s155 = smul.addr %s154, 128
          %s156 = scalar_lea.hbm %s3, %s155
          %s157 = sshll.u32 %s145, 4
          %s158 = int_to_ptr.vmem [resolvable:$true] %s157
          %163 = dma.hbm_to_vmem [thread:$0]  %s156, 512, %s158, %s142, 256, 256, 16
        $region20: #{tpu_custom_call.1} parent=15 // pred_fallthru
          _
        // Predicated region
        $region21: #{tpu_custom_call.1} parent=15 // pred_check
          %p164 = pneg %p87
        $region22: #{tpu_custom_call.1} parent=15 // pred_check_branch
          %166 = sbr.rel (%p164) target = $region24
        $region23: #{tpu_custom_call.1} parent=15 // pred_region
          %s167 = sld [smem:[#allocation3 + %s29]]
          %s168 = sld [smem:[#allocation4 + %s29]]
          %p169 = scmp.lt.s32.totalorder %s167, 1
          %s170 = scalar_select %p169, %s167, 1
          %p171 = scmp.lt.s32.totalorder %s168, 0
          %s172 = scalar_select %p171, %s168, 0
          %s173 = smul.addr %s172, 2
          %s174 = smul.addr %s170, 2
          %s175 = sadd.s32 %s173, %s174
          %s176 = smul.addr %s175, 2
          %s177 = scalar_lea.vmem %s4, %s176
          %s178 = sld [smem:[#allocation3 + %s29]]
          %s179 = sld [smem:[#allocation4 + %s29]]
        $region24: #{tpu_custom_call.1} parent=15 // pred_fallthru
          _
      $region16: #{tpu_custom_call.1} parent=5 // pred_fallthru
        _
      %p180 = scmp.le.s32.totalorder 1, %s29
      %p181 = scmp.lt.s32.totalorder %s29, 3
      %p182 = pnand %p180, %p181
      %p183 = pneg %p182
      // Predicated region
      $region25: #{tpu_custom_call.1} parent=5 // pred_check
        _
      $region26: #{tpu_custom_call.1} parent=5 // pred_check_branch
        %185 = sbr.rel (%p182) target = $region28
      $region27: #{tpu_custom_call.1} parent=5 // pred_region
        %s186 = ssub.s32 %s29, 1
        %s187 = sand.u32 %s48, 1
        %s188 = scalar_lea.sflag [#allocation7], %s187
        %s189 = sand.u32 %s48, 1
        %s190 = smul.addr %s189, 32
        %s191 = scalar_lea.vmem [#allocation6], %s190
        // Predicated region
        $region29: #{tpu_custom_call.1} parent=27 // pred_check
          %p192 = pneg %p61
        $region30: #{tpu_custom_call.1} parent=27 // pred_check_branch
          %194 = sbr.rel (%p192) target = $region32
        $region31: #{tpu_custom_call.1} parent=27 // pred_region
          %195 = dma.done %s188, 512
        $region32: #{tpu_custom_call.1} parent=27 // pred_fallthru
          _
        %s196 = sand.u32 %s48, 1
        %s197 = scalar_lea.sflag [#allocation7], %s196
        %s198 = sand.u32 %s48, 1
        %s199 = smul.addr %s198, 32
        %s200 = scalar_lea.vmem [#allocation6], %s199
        %p201 = pneg %p61
        %p202 = pneg %p58
        %s203 = sld [smem:[#allocation3 + %s34]]
        %s204 = sld [smem:[#allocation4 + %s34]]
        %p205 = scmp.lt.s32.totalorder %s203, 1
        %s206 = scalar_select %p205, %s203, 1
        %p207 = scmp.lt.s32.totalorder %s204, 0
        %s208 = scalar_select %p207, %s204, 0
        %s209 = smul.addr %s208, 2
        %s210 = smul.addr %s206, 2
        %s211 = sadd.s32 %s209, %s210
        %s212 = smul.addr %s211, 2
        %s213 = scalar_lea.vmem %s4, %s212
        %p214 = pneg %p93
        %p215 = pneg %p90
        %p216 = pneg %p119
        %p217 = pneg %p116
        %s218 = sand.u32 %s106, 1
        %s219 = scalar_lea.sflag [#allocation8], %s218
        %s220 = sand.u32 %s106, 1
        %s221 = smul.addr %s220, 32
        %s222 = scalar_lea.vmem [#allocation9], %s221
        %s223 = sld [smem:[#allocation3 + %s34]]
        %s224 = sld [smem:[#allocation4 + %s34]]
        %s225 = smul.u32 2, %s224
        %s226 = sld [smem:[#allocation3 + %s34]]
        %s227 = sld [smem:[#allocation4 + %s34]]
        %p228 = scmp.lt.s32.totalorder %s226, 1
        %s229 = scalar_select %p228, %s226, 1
        %p230 = scmp.lt.s32.totalorder %s227, 0
        %s231 = scalar_select %p230, %s227, 0
        %s232 = smul.addr %s231, 2
        %s233 = smul.addr %s229, 2
        %s234 = sadd.s32 %s232, %s233
        %s235 = smul.addr %s234, 2
        %s236 = scalar_lea.vmem %s4, %s235
        %s237 = sld [smem:[#allocation3 + %s34]]
        %s238 = sld [smem:[#allocation4 + %s34]]
        %s239 = sld [smem:[#allocation4 + %s34]]
        %s240 = sld [smem:[#allocation5 + %s34]]
        %s241 = smul.u32 %s239, 16
        %v242 = vld [vmem:[%s191] sm:$0xff]
        %v243 = vld [vmem:[%s191 + $0x8] sm:$0xff]
        %v244 = vld [vmem:[%s191 + $0x10] sm:$0xff]
        %v245 = vld [vmem:[%s191 + $0x18] sm:$0xff]
        %v246 = vld [vmem:[%s236] ss:$2 sm:$0x3]
        %s247 = scalar_lea.vmem %s236, 1
        %v248 = vld [vmem:[%s247] ss:$2 sm:$0x3]
        %v249 = vlaneseq
        %v250 = vand.u32 %v249, 127
        %v251 = vadd.s32 %v250, 128
        %v252 = vand.u32 %v250, 15
        %v253 = vand.u32 %v251, 15
        %vm254 = vcmp.ge.s32.totalorder %v250, 240
        %vm255 = vcmp.ge.s32.totalorder %v251, 240
        %vm256 = vcmp.lt.s32.totalorder %v250, 16
        %vm257 = vcmp.lt.s32.totalorder %v251, 16
        %vm258 = vcmp.eq.s32.totalorder %v252, 15
        %vm259 = vcmp.eq.s32.totalorder %v253, 15
        %vm260 = vcmp.eq.s32.totalorder %v252, 0
        %vm261 = vcmp.eq.s32.totalorder %v253, 0
        %v262 = vlaneseq
        %v263 = vshrl.u32 %v262, 7
        %v264 = vadd.s32 %v263, 8
        %vm265 = vcmp.eq.s32.totalorder %v263, 0
        %vm266 = vcmp.eq.s32.totalorder %v264, 0
        %vm267 = vcmp.eq.s32.totalorder %v263, 15
        %vm268 = vcmp.eq.s32.totalorder %v264, 15
        %v269 = vstv %s241
        %v270 = vadd.s32 %v263, %v269
        %v271 = vadd.s32 %v264, %v269
        %v272 = vmul.u32 %v270, 256
        %v273 = vmul.u32 %v271, 256
        %v274 = vadd.s32 %v272, %v250
        %v275 = vadd.s32 %v272, %v251
        %v276 = vadd.s32 %v273, %v250
        %v277 = vadd.s32 %v273, %v251
        %v278 = vstv %s240
        %v279 = vsub.s32 %v274, %v278
        %v280 = vsub.s32 %v275, %v278
        %v281 = vsub.s32 %v276, %v278
        %v282 = vsub.s32 %v277, %v278
        %vm283 = vcmp.ge.s32.totalorder %v279, 0
        %vm284 = vcmp.ge.s32.totalorder %v280, 0
        %vm285 = vcmp.ge.s32.totalorder %v281, 0
        %vm286 = vcmp.ge.s32.totalorder %v282, 0
        %vm287 = vcmp.lt.s32.totalorder %v279, 40
        %vm288 = vcmp.lt.s32.totalorder %v280, 40
        %vm289 = vcmp.lt.s32.totalorder %v281, 40
        %vm290 = vcmp.lt.s32.totalorder %v282, 40
        %vm291 = vmand %vm283, %vm287
        %vm292 = vmand %vm284, %vm288
        %vm293 = vmand %vm285, %vm289
        %vm294 = vmand %vm286, %vm290
        %vm295 = vcmp.lt.s32.totalorder %v279, 0
        %vm296 = vcmp.lt.s32.totalorder %v280, 0
        %vm297 = vcmp.lt.s32.totalorder %v281, 0
        %vm298 = vcmp.lt.s32.totalorder %v282, 0
        %v299 = vadd.s32 %v279, 4096
        %v300 = vadd.s32 %v280, 4096
        %v301 = vadd.s32 %v281, 4096
        %v302 = vadd.s32 %v282, 4096
        %vm303 = vcmp.lt.s32.totalorder %v299, 40
        %vm304 = vcmp.lt.s32.totalorder %v300, 40
        %vm305 = vcmp.lt.s32.totalorder %v301, 40
        %vm306 = vcmp.lt.s32.totalorder %v302, 40
        %vm307 = vmand %vm295, %vm303
        %vm308 = vmand %vm296, %vm304
        %vm309 = vmand %vm297, %vm305
        %vm310 = vmand %vm298, %vm306
        %vm311 = vmor %vm291, %vm307
        %vm312 = vmor %vm292, %vm308
        %vm313 = vmor %vm293, %vm309
        %vm314 = vmor %vm294, %vm310
        %v315 = vsel %vm311, 1, 0
        %v316 = vsel %vm312, 1, 0
        %v317 = vsel %vm313, 1, 0
        %v318 = vsel %vm314, 1, 0
        %v319 = vcvt.s32.f32 %v315
        %v320 = vcvt.s32.f32 %v316
        %v321 = vcvt.s32.f32 %v317
        %v322 = vcvt.s32.f32 %v318
        %v323 = vrot.slane %v242, 1
        %v324 = vrot.slane %v243, 1
        %v325 = vrot.slane %v244, 1
        %v326 = vrot.slane %v245, 1
        %vm327 = vcmp.lt.s32.totalorder %v263, 7
        %v328 = vsel %vm327, %v323, %v325
        %v329 = vsel %vm327, %v324, %v326
        %v330 = vsel %vm327, %v325, %v323
        %v331 = vsel %vm327, %v326, %v324
        %v332 = vsel %vm267, 1, 0
        %v333 = vsel %vm268, 1, 0
        %vm334 = vcmp.eq.s32.totalorder %v332, 1
        %vm335 = vcmp.eq.s32.totalorder %v333, 1
        %v337 = vlaneseq
        %v338 = vshrl.u32 %v337, 7
        %v339 = vsub.s32 0, %v338
        %v340 = vrot.slane %v248, %v339
        %v341 = vlaneseq
        %v342 = vshrl.u32 %v341, 7
        %v343 = vsub.s32 1, %v342
        %v344 = vrot.slane %v248, %v343
        %v347 = vsel %vm334, %v340, %v328
        %v348 = vsel %vm334, %v344, %v329
        %v349 = vsel %vm335, %v340, %v330
        %v350 = vsel %vm335, %v344, %v331
        %v351 = vsub.f32 %v347, %v242
        %v352 = vsub.f32 %v348, %v243
        %v353 = vsub.f32 %v349, %v244
        %v354 = vsub.f32 %v350, %v245
        %355 = vrot.lane.b32.xlu0 %v242, 112
        %v356 = vpop.permute.xlu0 %355
        %357 = vrot.lane.b32.xlu0 %v244, 112
        %v358 = vpop.permute.xlu0 %357
        %359 = vrot.lane.b32.xlu0 %v243, 112
        %v360 = vpop.permute.xlu0 %359
        %361 = vrot.lane.b32.xlu0 %v245, 112
        %v362 = vpop.permute.xlu0 %361
        %vm363 = vcmp.lt.s32.totalorder %v250, 112
        %v364 = vsel %vm363, %v356, %v360
        %v365 = vsel %vm363, %v358, %v362
        %v366 = vsel %vm363, %v360, %v356
        %v367 = vsel %vm363, %v362, %v358
        %v368 = vsel %vm254, 1, 0
        %v369 = vsel %vm255, 1, 0
        %vm370 = vcmp.eq.s32.totalorder %v368, 1
        %vm371 = vcmp.eq.s32.totalorder %v369, 1
        %v372 = vsel %vm370, 0.0, %v364
        %v373 = vsel %vm371, 0.0, %v366
        %v374 = vsel %vm370, 0.0, %v365
        %v375 = vsel %vm371, 0.0, %v367
        %v376 = vsub.f32 %v372, %v242
        %v377 = vsub.f32 %v373, %v243
        %v378 = vsub.f32 %v374, %v244
        %v379 = vsub.f32 %v375, %v245
        %380 = vrot.lane.b32.xlu0 %v242, 127
        %v381 = vpop.permute.xlu0 %380
        %382 = vrot.lane.b32.xlu0 %v244, 127
        %v383 = vpop.permute.xlu0 %382
        %384 = vrot.lane.b32.xlu0 %v243, 127
        %v385 = vpop.permute.xlu0 %384
        %386 = vrot.lane.b32.xlu0 %v245, 127
        %v387 = vpop.permute.xlu0 %386
        %vm388 = vcmp.lt.s32.totalorder %v250, 127
        %v389 = vsel %vm388, %v381, %v385
        %v390 = vsel %vm388, %v383, %v387
        %v391 = vsel %vm388, %v385, %v381
        %v392 = vsel %vm388, %v387, %v383
        %v393 = vsel %vm258, 1, 0
        %v394 = vsel %vm259, 1, 0
        %vm395 = vcmp.eq.s32.totalorder %v393, 1
        %vm396 = vcmp.eq.s32.totalorder %v394, 1
        %v397 = vsel %vm395, 0.0, %v389
        %v398 = vsel %vm396, 0.0, %v391
        %v399 = vsel %vm395, 0.0, %v390
        %v400 = vsel %vm396, 0.0, %v392
        %v401 = vsub.f32 %v397, %v242
        %v402 = vsub.f32 %v398, %v243
        %v403 = vsub.f32 %v399, %v244
        %v404 = vsub.f32 %v400, %v245
        %v405 = vmul.f32 %v351, %v351
        %v406 = vmul.f32 %v352, %v352
        %v407 = vmul.f32 %v353, %v353
        %v408 = vmul.f32 %v354, %v354
        %v409 = vadd.f32 %v405, 1e-09
        %v410 = vadd.f32 %v406, 1e-09
        %v411 = vadd.f32 %v407, 1e-09
        %v412 = vadd.f32 %v408, 1e-09
        %v413 = vmul.f32 %v376, %v376
        %v414 = vmul.f32 %v377, %v377
        %v415 = vmul.f32 %v378, %v378
        %v416 = vmul.f32 %v379, %v379
        %v417 = vadd.f32 %v409, %v413
        %v418 = vadd.f32 %v410, %v414
        %v419 = vadd.f32 %v411, %v415
        %v420 = vadd.f32 %v412, %v416
        %v421 = vmul.f32 %v401, %v401
        %v422 = vmul.f32 %v402, %v402
        %v423 = vmul.f32 %v403, %v403
        %v424 = vmul.f32 %v404, %v404
        %v425 = vadd.f32 %v417, %v421
        %v426 = vadd.f32 %v418, %v422
        %v427 = vadd.f32 %v419, %v423
        %v428 = vadd.f32 %v420, %v424
        %v429 = vrsqrt.pop %v425
        %v430 = vrsqrt.pop %v426
        %v431 = vrsqrt.pop %v427
        %v432 = vrsqrt.pop %v428
        %v433 = vmul.f32 %v319, %v429
        %v434 = vmul.f32 %v320, %v430
        %v435 = vmul.f32 %v321, %v431
        %v436 = vmul.f32 %v322, %v432
        %v437 = vmul.f32 %v433, 2e-06
        %v438 = vmul.f32 %v434, 2e-06
        %v439 = vmul.f32 %v435, 2e-06
        %v440 = vmul.f32 %v436, 2e-06
        %v441 = vmul.f32 %v351, %v437
        %v442 = vmul.f32 %v352, %v438
        %v443 = vmul.f32 %v353, %v439
        %v444 = vmul.f32 %v354, %v440
        %v445 = vmul.f32 %v376, %v437
        %v446 = vmul.f32 %v377, %v438
        %v447 = vmul.f32 %v378, %v439
        %v448 = vmul.f32 %v379, %v440
        %v449 = vmul.f32 %v401, %v437
        %v450 = vmul.f32 %v402, %v438
        %v451 = vmul.f32 %v403, %v439
        %v452 = vmul.f32 %v404, %v440
        %s453 = ssub.s32 %s241, 1
        %s454 = smul.u32 %s453, 256
        %v455 = vstv %s454
        %v456 = vadd.s32 %v455, %v250
        %v457 = vadd.s32 %v455, %v251
        %v458 = vsub.s32 %v456, %v278
        %v459 = vsub.s32 %v457, %v278
        %vm460 = vcmp.ge.s32.totalorder %v458, 0
        %vm461 = vcmp.ge.s32.totalorder %v459, 0
        %vm462 = vcmp.lt.s32.totalorder %v458, 40
        %vm463 = vcmp.lt.s32.totalorder %v459, 40
        %vm464 = vmand %vm460, %vm462
        %vm465 = vmand %vm461, %vm463
        %vm466 = vcmp.lt.s32.totalorder %v458, 0
        %vm467 = vcmp.lt.s32.totalorder %v459, 0
        %v468 = vadd.s32 %v458, 4096
        %v469 = vadd.s32 %v459, 4096
        %vm470 = vcmp.lt.s32.totalorder %v468, 40
        %vm471 = vcmp.lt.s32.totalorder %v469, 40
        %vm472 = vmand %vm466, %vm470
        %vm473 = vmand %vm467, %vm471
        %vm474 = vmor %vm464, %vm472
        %vm475 = vmor %vm465, %vm473
        %p476 = scmp.ge.s32.totalorder %s453, 0
        %s477 = scalar_select %p476, 1, 0
        %v478 = vstv %s477
        %vm479 = vcmp.eq.s32.totalorder %v478, 1
        %vm480 = vmand %vm474, %vm479
        %vm481 = vmand %vm475, %vm479
        %v482 = vsel %vm480, 1, 0
        %v483 = vsel %vm481, 1, 0
        %v484 = vcvt.s32.f32 %v482
        %v485 = vcvt.s32.f32 %v483
        %v486 = vld [vmem:[%s191] ss:$8 sm:$0x3]
        %v487 = vsub.f32 %v486, %v246
        %v489 = vlaneseq
        %v490 = vshrl.u32 %v489, 7
        %v491 = vsub.s32 0, %v490
        %v492 = vrot.slane %v246, %v491
        %v493 = vlaneseq
        %v494 = vshrl.u32 %v493, 7
        %v495 = vsub.s32 1, %v494
        %v496 = vrot.slane %v246, %v495
        %499 = vrot.lane.b32.xlu0 %v492, 112
        %v500 = vpop.permute.xlu0 %499
        %501 = vrot.lane.b32.xlu0 %v496, 112
        %v502 = vpop.permute.xlu0 %501
        %v503 = vsel %vm363, %v500, %v502
        %v504 = vsel %vm363, %v502, %v500
        %v505 = vsel %vm254, 0.0, %v503
        %v506 = vsel %vm255, 0.0, %v504
        %v507 = vsub.f32 %v505, %v492
        %v508 = vsub.f32 %v506, %v496
        %509 = vrot.lane.b32.xlu0 %v492, 127
        %v510 = vpop.permute.xlu0 %509
        %511 = vrot.lane.b32.xlu0 %v496, 127
        %v512 = vpop.permute.xlu0 %511
        %v513 = vsel %vm388, %v510, %v512
        %v514 = vsel %vm388, %v512, %v510
        %v515 = vsel %vm258, 0.0, %v513
        %v516 = vsel %vm259, 0.0, %v514
        %v517 = vsub.f32 %v515, %v492
        %v518 = vsub.f32 %v516, %v496
        %v519 = vmul.f32 %v487, %v487
        %v520 = vadd.f32 %v519, 1e-09
        %v521 = vmul.f32 %v507, %v507
        %v522 = vmul.f32 %v508, %v508
        %v525 = vcombine.low %v521, %v522
        %v527 = vunpack.c.l.s4 1966171168
        %v528 = vunpack.c.0.s8 %v527
        %v529 = vlaneseq
        %v530 = vshrl.u32 %v529, 7
        %v531 = vsub.s32 %v528, %v530
        %v532 = vrot.slane %v525, %v531
        %v534 = vunpack.c.l.s4 1966171168
        %v535 = vunpack.c.0.s8 %v534
        %v536 = vlaneseq
        %v537 = vshrl.u32 %v536, 7
        %v538 = vsub.s32 %v535, %v537
        %v539 = vrot.slane %v532, %v538
        %v541 = vadd.f32 %v520, %v539
        %v542 = vmul.f32 %v517, %v517
        %v543 = vmul.f32 %v518, %v518
        %v546 = vcombine.low %v542, %v543
        %v548 = vunpack.c.l.s4 1966171168
        %v549 = vunpack.c.0.s8 %v548
        %v550 = vlaneseq
        %v551 = vshrl.u32 %v550, 7
        %v552 = vsub.s32 %v549, %v551
        %v553 = vrot.slane %v546, %v552
        %v555 = vunpack.c.l.s4 1966171168
        %v556 = vunpack.c.0.s8 %v555
        %v557 = vlaneseq
        %v558 = vshrl.u32 %v557, 7
        %v559 = vsub.s32 %v556, %v558
        %v560 = vrot.slane %v553, %v559
        %v562 = vadd.f32 %v541, %v560
        %v563 = vrsqrt.pop %v562
        %v565 = vlaneseq
        %v566 = vshrl.u32 %v565, 7
        %v567 = vsub.s32 0, %v566
        %v568 = vrot.slane %v563, %v567
        %v569 = vlaneseq
        %v570 = vshrl.u32 %v569, 7
        %v571 = vsub.s32 1, %v570
        %v572 = vrot.slane %v563, %v571
        %v575 = vmul.f32 %v484, %v568
        %v576 = vmul.f32 %v485, %v572
        %v577 = vmul.f32 %v575, 2e-06
        %v578 = vmul.f32 %v576, 2e-06
        %v581 = vcombine.low %v577, %v578
        %v583 = vunpack.c.l.s4 1966171168
        %v584 = vunpack.c.0.s8 %v583
        %v585 = vlaneseq
        %v586 = vshrl.u32 %v585, 7
        %v587 = vsub.s32 %v584, %v586
        %v588 = vrot.slane %v581, %v587
        %v590 = vunpack.c.l.s4 1966171168
        %v591 = vunpack.c.0.s8 %v590
        %v592 = vlaneseq
        %v593 = vshrl.u32 %v592, 7
        %v594 = vsub.s32 %v591, %v593
        %v595 = vrot.slane %v588, %v594
        %v597 = vmul.f32 %v487, %v595
        %v598 = vrot.slane %v441, 7
        %v599 = vrot.slane %v442, 7
        %v600 = vrot.slane %v443, 7
        %v601 = vrot.slane %v444, 7
        %vm602 = vcmp.lt.s32.totalorder %v263, 1
        %v603 = vsel %vm602, %v598, %v600
        %v604 = vsel %vm602, %v599, %v601
        %v605 = vsel %vm602, %v600, %v598
        %v606 = vsel %vm602, %v601, %v599
        %v607 = vsel %vm265, 1, 0
        %v608 = vsel %vm266, 1, 0
        %vm609 = vcmp.eq.s32.totalorder %v607, 1
        %vm610 = vcmp.eq.s32.totalorder %v608, 1
        %v612 = vlaneseq
        %v613 = vshrl.u32 %v612, 7
        %v614 = vsub.s32 0, %v613
        %v615 = vrot.slane %v597, %v614
        %v616 = vlaneseq
        %v617 = vshrl.u32 %v616, 7
        %v618 = vsub.s32 1, %v617
        %v619 = vrot.slane %v597, %v618
        %v622 = vsel %vm609, %v615, %v605
        %v623 = vsel %vm609, %v619, %v606
        %v624 = vsel %vm610, %v615, %v603
        %v625 = vsel %vm610, %v619, %v604
        %v626 = vadd.f32 %v441, %v445
        %v627 = vadd.f32 %v442, %v446
        %v628 = vadd.f32 %v443, %v447
        %v629 = vadd.f32 %v444, %v448
        %v630 = vadd.f32 %v626, %v449
        %v631 = vadd.f32 %v627, %v450
        %v632 = vadd.f32 %v628, %v451
        %v633 = vadd.f32 %v629, %v452
        %v634 = vsub.f32 %v622, %v630
        %v635 = vsub.f32 %v623, %v631
        %v636 = vsub.f32 %v624, %v632
        %v637 = vsub.f32 %v625, %v633
        %638 = vrot.lane.b32.xlu0 %v445, 16
        %v639 = vpop.permute.xlu0 %638
        %640 = vrot.lane.b32.xlu0 %v447, 16
        %v641 = vpop.permute.xlu0 %640
        %642 = vrot.lane.b32.xlu0 %v446, 16
        %v643 = vpop.permute.xlu0 %642
        %644 = vrot.lane.b32.xlu0 %v448, 16
        %v645 = vpop.permute.xlu0 %644
        %v646 = vsel %vm256, %v639, %v643
        %v647 = vsel %vm256, %v641, %v645
        %v648 = vsel %vm256, %v643, %v639
        %v649 = vsel %vm256, %v645, %v641
        %v650 = vsel %vm256, 1, 0
        %v651 = vsel %vm257, 1, 0
        %vm652 = vcmp.eq.s32.totalorder %v650, 1
        %vm653 = vcmp.eq.s32.totalorder %v651, 1
        %v654 = vsel %vm652, 0.0, %v648
        %v655 = vsel %vm653, 0.0, %v646
        %v656 = vsel %vm652, 0.0, %v649
        %v657 = vsel %vm653, 0.0, %v647
        %v658 = vadd.f32 %v634, %v654
        %v659 = vadd.f32 %v635, %v655
        %v660 = vadd.f32 %v636, %v656
        %v661 = vadd.f32 %v637, %v657
        %662 = vrot.lane.b32.xlu0 %v449, 1
        %v663 = vpop.permute.xlu0 %662
        %664 = vrot.lane.b32.xlu0 %v451, 1
        %v665 = vpop.permute.xlu0 %664
        %666 = vrot.lane.b32.xlu0 %v450, 1
        %v667 = vpop.permute.xlu0 %666
        %668 = vrot.lane.b32.xlu0 %v452, 1
        %v669 = vpop.permute.xlu0 %668
        %vm670 = vcmp.lt.s32.totalorder %v250, 1
        %v671 = vsel %vm670, %v663, %v667
        %v672 = vsel %vm670, %v665, %v669
        %v673 = vsel %vm670, %v667, %v663
        %v674 = vsel %vm670, %v669, %v665
        %v675 = vsel %vm260, 1, 0
        %v676 = vsel %vm261, 1, 0
        %vm677 = vcmp.eq.s32.totalorder %v675, 1
        %vm678 = vcmp.eq.s32.totalorder %v676, 1
        %v679 = vsel %vm677, 0.0, %v673
        %v680 = vsel %vm678, 0.0, %v671
        %v681 = vsel %vm677, 0.0, %v674
        %v682 = vsel %vm678, 0.0, %v672
        %v683 = vadd.f32 %v658, %v679
        %v684 = vadd.f32 %v659, %v680
        %v685 = vadd.f32 %v660, %v681
        %v686 = vadd.f32 %v661, %v682
        %687 = vst [vmem:[%s222] sm:$0xff] %v683
        %688 = vst [vmem:[%s222 + $0x8] sm:$0xff] %v684
        %689 = vst [vmem:[%s222 + $0x10] sm:$0xff] %v685
        %690 = vst [vmem:[%s222 + $0x18] sm:$0xff] %v686
        %s691 = sand.u32 %s106, 1
        %s692 = scalar_lea.sflag [#allocation8], %s691
        %s693 = sand.u32 %s106, 1
        %s694 = smul.addr %s693, 32
        %s695 = scalar_lea.vmem [#allocation9], %s694
        // Predicated region
        $region33: #{tpu_custom_call.1} parent=27 // pred_check
          %p696 = pneg %p116
        $region34: #{tpu_custom_call.1} parent=27 // pred_check_branch
          %698 = sbr.rel (%p696) target = $region36
        $region35: #{tpu_custom_call.1} parent=27 // pred_region
          %s700 = ssub.s32 512, 512
          %701 = vsyncadd %s692, %s700
          %s702 = smul.addr %s34, 4
          %s703 = smul.addr %s702, 128
          %s704 = scalar_lea.hbm %s5, %s703
          %s705 = sshll.u32 %s695, 4
          %s706 = int_to_ptr.vmem [resolvable:$true] %s705
          %711 = dma.vmem_to_hbm [thread:$0]  %s706, 512, %s704, %s692, 256, 256, 16
        $region36: #{tpu_custom_call.1} parent=27 // pred_fallthru
          _
      $region28: #{tpu_custom_call.1} parent=5 // pred_fallthru
        _
      %p712 = scmp.le.s32.totalorder 2, %s29
      // Predicated region
      $region37: #{tpu_custom_call.1} parent=5 // pred_check
        %p713 = pneg %p712
      $region38: #{tpu_custom_call.1} parent=5 // pred_check_branch
        %715 = sbr.rel (%p713) target = $region40
      $region39: #{tpu_custom_call.1} parent=5 // pred_region
        %s716 = ssub.s32 %s29, 2
        // Predicated region
        $region41: #{tpu_custom_call.1} parent=39 // pred_check
          %p717 = pneg %p122
        $region42: #{tpu_custom_call.1} parent=39 // pred_check_branch
          %719 = sbr.rel (%p717) target = $region44
        $region43: #{tpu_custom_call.1} parent=39 // pred_region
          %s720 = sand.u32 %s107, 1
          %s721 = scalar_lea.sflag [#allocation8], %s720
          %s722 = sand.u32 %s107, 1
          %s723 = smul.addr %s722, 32
          %s724 = scalar_lea.vmem [#allocation9], %s723
          %725 = dma.done %s721, 512
        $region44: #{tpu_custom_call.1} parent=39 // pred_fallthru
          _
      $region40: #{tpu_custom_call.1} parent=5 // pred_fallthru
        _
    $region6: #{tpu_custom_call.1} parent=1 // loop_footer
      %s33 = sadd.s32 1, %s29
    $region7: #{tpu_custom_call.1} parent=1 // loop_footer_branch
      %28 = sbr.rel target = $region3
    $region8: #{tpu_custom_call.1} parent=1 // loop_exit
      _
    %726 = vsyncpa [#allocation7], 1
    %s727 = scalar_lea.sflag [#allocation7], 1
    %728 = vsyncpa %s727, 1
    %729 = vsyncpa [#allocation8], 1
    %s730 = scalar_lea.sflag [#allocation8], 1
    %731 = vsyncpa %s730, 1

</llo_original>
